<compile_context>
chip_gen: v7x
topology: tpu7x:2x2x1
jax: 0.10.0
libtpu: 0.0.40
codegen_flags: <defaults>
</compile_context>

<pallas_src>
import jax
import jax.numpy as jnp
from jax.experimental import pallas as pl
from jax.experimental.pallas import tpu as pltpu


def _round_up(x, m):
    return ((x + m - 1) // m) * m


def _fused_heads_kernel(b2_ref, ic_ref, up_ref, w_ref, v_ref, o1_ref, o2_ref):
    """One batch tile, both heads fused.

    ic_ref : [tb*n, 2*emb] bf16  item features, heads concatenated on K
    up_ref : [tb, 2*hid]   f32   user projection + first-layer bias, per head
    w_ref  : [2*emb, 2*hid] bf16 block-diagonal first-layer (item) weight
    v_ref  : [2, 2*hid]    f32   zero-padded second-layer weights per head
    b2_ref : [2]           f32   second-layer biases (SMEM scalars)
    o?_ref : [tb, n]       f32   per-head logits
    """
    tb, two_hid = up_ref.shape
    n = o1_ref.shape[1]

    # First layer (item halves of both heads): single bf16 MXU matmul, f32 acc.
    h = jnp.dot(ic_ref[...], w_ref[...], preferred_element_type=jnp.float32)
    # Layout-view reshape (n is padded to a multiple of 8 in the wrapper when cheap).
    h = h.reshape(tb, n, two_hid)
    # Add hoisted user projection (+ b1) and ReLU.
    h = jnp.maximum(h + up_ref[...][:, None, :], 0.0)

    # Second layer (hid -> 1) per head: VPU multiply + XLU lane reduction over
    # zero-padded weight rows (head1 lives in lanes [0,hid), head2 in [hid,2hid)).
    v = v_ref[...]
    o1 = jnp.sum(h * v[0:1, :][None], axis=-1) + b2_ref[0]
    o2 = jnp.sum(h * v[1:2, :][None], axis=-1) + b2_ref[1]
    o1_ref[...] = o1.astype(o1_ref.dtype)
    o2_ref[...] = o2.astype(o2_ref.dtype)


def _choose_tiles(bs, n):
    # Pad n to a multiple of 8 only when the extra streamed bytes are <= 12.5%;
    # otherwise keep it ragged (the f32 in-kernel reshape then costs a small
    # VMEM relayout, which is cheaper than extra HBM traffic for small n).
    n_pad = _round_up(n, 8)
    if n_pad != n and (n_pad - n) * 8 > n:
        n_pad = n

    # VMEM budget per batch row (bytes): double-buffered bf16 item block
    # (lane-padded to 128) + f32 intermediates of similar footprint + outputs.
    lane = 128
    per_row = (2 * n_pad * lane * 2            # item block, 2 pipeline buffers
               + 3 * n_pad * lane * 4          # f32 h / products
               + 2 * 2 * max(n_pad, lane) * 4  # two outputs, 2 buffers
               + 2 * lane * 4)                 # user projection block
    budget = 24 * 1024 * 1024                  # headroom under the 48 MiB limit
    tb = max(8, min(512, (budget // per_row) // 8 * 8))

    bs8 = _round_up(bs, 8)
    if bs8 <= 16:
        tb = bs8
    else:
        # Keep at least two grid steps so the "parallel" batch axis can be
        # sharded across both TensorCores on v7x.
        tb = min(tb, _round_up(pl.cdiv(bs8, 2), 8))
    bs_pad = _round_up(bs, tb)
    return tb, bs_pad, n_pad


def init_params(key, emb_dim, hid_dim, dtype=jnp.float32):
    """Deterministic init mimicking nn.Linear (uniform +-1/sqrt(fan_in))."""
    ks = jax.random.split(key, 8)

    def lin(kw, kb, fan_in, fan_out):
        bound = 1.0 / jnp.sqrt(fan_in)
        w = jax.random.uniform(kw, (fan_in, fan_out), dtype, -bound, bound)
        b = jax.random.uniform(kb, (1, fan_out), dtype, -bound, bound)
        return w, b

    w1a, b1a = lin(ks[0], ks[1], 2 * emb_dim, hid_dim)
    w1b, b1b = lin(ks[2], ks[3], hid_dim, 1)
    w2a, b2a = lin(ks[4], ks[5], 2 * emb_dim, hid_dim)
    w2b, b2b = lin(ks[6], ks[7], hid_dim, 1)
    return {"fc1": (w1a, b1a, w1b, b1b), "fc2": (w2a, b2a, w2b, b2b)}


def predict_module(params, user_spf1, user_spf2, i_feat_d1, i_feat_d2):
    w1a, b1a, w1b, b1b = params["fc1"]
    w2a, b2a, w2b, b2b = params["fc2"]

    bs, n, emb = i_feat_d1.shape
    hid = w1a.shape[1]
    assert i_feat_d2.shape == (bs, n, emb)

    tb, bs_pad, n_pad = _choose_tiles(bs, n)

    # Hoisted user half of the first layer (+ b1), per head (tiny, f32).
    up = jnp.concatenate([user_spf1 @ w1a[:emb] + b1a,
                          user_spf2 @ w2a[:emb] + b2a], axis=-1)        # [bs, 2*hid]
    up = jnp.pad(up, ((0, bs_pad - bs), (0, 0)))

    # Item features of both heads, concatenated on K, bf16, row-flattened.
    # (cast + concat + pad fuse into one XLA pass; reshape is a free view)
    ic = jnp.concatenate([i_feat_d1.astype(jnp.bfloat16),
                          i_feat_d2.astype(jnp.bfloat16)], axis=-1)     # [bs, n, 2*emb]
    ic = jnp.pad(ic, ((0, bs_pad - bs), (0, n_pad - n), (0, 0)))
    ic2d = ic.reshape(bs_pad * n_pad, 2 * emb)

    # Block-diagonal first-layer item weight: [i1|i2] @ Wblk = [i1@w1 | i2@w2].
    zeros = jnp.zeros((emb, hid), w1a.dtype)
    w_blk = jnp.concatenate(
        [jnp.concatenate([w1a[emb:], zeros], axis=1),
         jnp.concatenate([zeros, w2a[emb:]], axis=1)], axis=0).astype(jnp.bfloat16)

    # Zero-padded second-layer weights (lane-masked reductions per head).
    zh = jnp.zeros((hid,), w1b.dtype)
    vpair = jnp.stack([jnp.concatenate([w1b[:, 0], zh]),
                       jnp.concatenate([zh, w2b[:, 0]])])                # [2, 2*hid]
    b2_pair = jnp.stack([b1b.reshape(()), b2b.reshape(())])              # [2] -> SMEM

    grid = (bs_pad // tb,)
    rows = bs_pad * n_pad
    cost = pl.CostEstimate(
        flops=2 * rows * (2 * emb) * (2 * hid) + 4 * rows * (2 * hid),
        transcendentals=0,
        bytes_accessed=(rows * (2 * emb) * 2          # bf16 item stream
                        + bs_pad * (2 * hid) * 4      # user projection
                        + (2 * emb) * (2 * hid) * 2   # block-diag weight
                        + 2 * rows * 4))              # outputs

    o1, o2 = pl.pallas_call(
        _fused_heads_kernel,
        out_shape=(jax.ShapeDtypeStruct((bs_pad, n_pad), jnp.float32),
                   jax.ShapeDtypeStruct((bs_pad, n_pad), jnp.float32)),
        grid=grid,
        in_specs=[
            pl.BlockSpec(memory_space=pltpu.MemorySpace.SMEM),           # b2 scalars
            pl.BlockSpec((tb * n_pad, 2 * emb), lambda g: (g, 0)),       # item stream
            pl.BlockSpec((tb, 2 * hid), lambda g: (g, 0)),               # user proj
            pl.BlockSpec((2 * emb, 2 * hid), lambda g: (0, 0)),          # Wblk
            pl.BlockSpec((2, 2 * hid), lambda g: (0, 0)),                # vpair
        ],
        out_specs=(pl.BlockSpec((tb, n_pad), lambda g: (g, 0)),
                   pl.BlockSpec((tb, n_pad), lambda g: (g, 0))),
        compiler_params=pltpu.CompilerParams(
            dimension_semantics=("parallel",),
            vmem_limit_bytes=48 * 1024 * 1024),
        cost_estimate=cost,
    )(b2_pair, ic2d, up, w_blk, vpair)

    logits_d1 = o1[:bs, :n]
    logits_d2 = o2[:bs, :n]
    # torch .squeeze() removes all size-1 dims.
    return jnp.squeeze(logits_d1), jnp.squeeze(logits_d2)


def _reference(params, user_spf1, user_spf2, i_feat_d1, i_feat_d2):
    """Pure-JAX (f32) reference mirroring the PyTorch module."""
    def head(p, u, it):
        w_a, b_a, w_b, b_b = p
        u = jnp.broadcast_to(u[:, None, :], it.shape)
        x = jnp.concatenate([u, it], axis=-1)
        h = jnp.maximum(x @ w_a + b_a[0], 0.0)
        return jnp.squeeze(h @ w_b + b_b[0])
    return (head(params["fc1"], user_spf1, i_feat_d1),
            head(params["fc2"], user_spf2, i_feat_d2))


if __name__ == "__main__":
    emb_dim, hid_dim = 32, 32
    bs, n = 2, 8  # n negative samples (1 for train, 99 for test in original)

    key = jax.random.PRNGKey(0)
    k_p, k_u1, k_u2, k_i1, k_i2 = jax.random.split(key, 5)

    params = init_params(k_p, emb_dim, hid_dim)
    user_spf1 = jax.random.normal(k_u1, (bs, emb_dim), jnp.float32)
    user_spf2 = jax.random.normal(k_u2, (bs, emb_dim), jnp.float32)
    i_feat_d1 = jax.random.normal(k_i1, (bs, n, emb_dim), jnp.float32)
    i_feat_d2 = jax.random.normal(k_i2, (bs, n, emb_dim), jnp.float32)

    out1, out2 = jax.jit(predict_module)(params, user_spf1, user_spf2,
                                         i_feat_d1, i_feat_d2)
    jax.block_until_ready((out1, out2))

    ref1, ref2 = _reference(params, user_spf1, user_spf2, i_feat_d1, i_feat_d2)
    assert out1.shape == (bs, n) and out2.shape == (bs, n)
    # bf16 streaming of the item features -> loosened tolerance vs f32 reference.
    assert jnp.allclose(out1, ref1, atol=2e-2, rtol=2e-2), jnp.max(jnp.abs(out1 - ref1))
    assert jnp.allclose(out2, ref2, atol=2e-2, rtol=2e-2), jnp.max(jnp.abs(out2 - ref2))

    print("KERNEL_OK")
</pallas_src>

<mosaic_0001>
module attributes {stable_mosaic.version = 11 : i64} {
  func.func @_fused_heads_kernel(%arg0: i32, %arg1: memref<2xf32, #tpu.memory_space<smem>>, %arg2: memref<64x64xbf16, #tpu.memory_space<vmem>>, %arg3: memref<8x64xf32, #tpu.memory_space<vmem>>, %arg4: memref<64x64xbf16, #tpu.memory_space<vmem>>, %arg5: memref<2x64xf32, #tpu.memory_space<vmem>>, %arg6: memref<8x8xf32, #tpu.memory_space<vmem>>, %arg7: memref<8x8xf32, #tpu.memory_space<vmem>>) attributes {dimension_semantics = [#tpu.dimension_semantics<parallel>], iteration_bounds = array<i64: 1>, scalar_prefetch = 0 : i64, scratch_operands = 0 : i64, tpu.core_type = #tpu.core_type<tc>, window_params = [{transform_indices = @transform_0, window_bounds = array<i64: 2>}, {transform_indices = @transform_1, window_bounds = array<i64: 64, 64>}, {transform_indices = @transform_2, window_bounds = array<i64: 8, 64>}, {pipeline_mode = #tpu.pipeline_mode<synchronous>, transform_indices = @transform_3, window_bounds = array<i64: 64, 64>}, {pipeline_mode = #tpu.pipeline_mode<synchronous>, transform_indices = @transform_4, window_bounds = array<i64: 2, 64>}, {transform_indices = @transform_5, window_bounds = array<i64: 8, 8>}, {transform_indices = @transform_6, window_bounds = array<i64: 8, 8>}]} {
    %c0 = arith.constant 0 : index
    %c0_0 = arith.constant 0 : index
    %0 = vector.load %arg2[%c0, %c0_0] : memref<64x64xbf16, #tpu.memory_space<vmem>>, vector<64x64xbf16>
    %c0_1 = arith.constant 0 : index
    %c0_2 = arith.constant 0 : index
    %1 = vector.load %arg4[%c0_1, %c0_2] : memref<64x64xbf16, #tpu.memory_space<vmem>>, vector<64x64xbf16>
    %cst = arith.constant dense<0.000000e+00> : vector<64x64xf32>
    %2 = tpu.matmul %0, %1, %cst {dimension_numbers = #tpu.dot_dimension_numbers<[1], [0], [0], [1], [0, 0, 1, 1], [], []>} : vector<64x64xbf16>, vector<64x64xbf16>, vector<64x64xf32> -> vector<64x64xf32>
    %3 = vector.shape_cast %2 : vector<64x64xf32> to vector<8x8x64xf32>
    %c0_3 = arith.constant 0 : index
    %c0_4 = arith.constant 0 : index
    %4 = vector.load %arg3[%c0_3, %c0_4] : memref<8x64xf32, #tpu.memory_space<vmem>>, vector<8x64xf32>
    %5 = vector.shape_cast %4 : vector<8x64xf32> to vector<8x1x64xf32>
    %6 = vector.broadcast %5 : vector<8x1x64xf32> to vector<8x8x64xf32>
    %7 = arith.addf %3, %6 : vector<8x8x64xf32>
    %cst_5 = arith.constant 0.000000e+00 : f32
    %8 = vector.broadcast %cst_5 : f32 to vector<8x8x64xf32>
    %9 = arith.maximumf %7, %8 : vector<8x8x64xf32>
    %c0_6 = arith.constant 0 : index
    %c0_7 = arith.constant 0 : index
    %10 = vector.load %arg5[%c0_6, %c0_7] : memref<2x64xf32, #tpu.memory_space<vmem>>, vector<2x64xf32>
    %11 = vector.extract_strided_slice %10 {offsets = [0, 0], sizes = [1, 64], strides = [1, 1]} : vector<2x64xf32> to vector<1x64xf32>
    %12 = vector.shape_cast %11 : vector<1x64xf32> to vector<1x1x64xf32>
    %13 = vector.broadcast %12 : vector<1x1x64xf32> to vector<8x8x64xf32>
    %14 = arith.mulf %9, %13 : vector<8x8x64xf32>
    %cst_8 = arith.constant dense<0.000000e+00> : vector<8x8xf32>
    %15 = vector.multi_reduction <add>, %14, %cst_8 [2] : vector<8x8x64xf32> to vector<8x8xf32>
    %c0_9 = arith.constant 0 : index
    %16 = memref.load %arg1[%c0_9] : memref<2xf32, #tpu.memory_space<smem>>
    %17 = vector.broadcast %16 : f32 to vector<8x8xf32>
    %18 = arith.addf %15, %17 : vector<8x8xf32>
    %19 = vector.extract_strided_slice %10 {offsets = [1, 0], sizes = [1, 64], strides = [1, 1]} : vector<2x64xf32> to vector<1x64xf32>
    %20 = vector.shape_cast %19 : vector<1x64xf32> to vector<1x1x64xf32>
    %21 = vector.broadcast %20 : vector<1x1x64xf32> to vector<8x8x64xf32>
    %22 = arith.mulf %9, %21 : vector<8x8x64xf32>
    %cst_10 = arith.constant dense<0.000000e+00> : vector<8x8xf32>
    %23 = vector.multi_reduction <add>, %22, %cst_10 [2] : vector<8x8x64xf32> to vector<8x8xf32>
    %c1 = arith.constant 1 : index
    %24 = memref.load %arg1[%c1] : memref<2xf32, #tpu.memory_space<smem>>
    %25 = vector.broadcast %24 : f32 to vector<8x8xf32>
    %26 = arith.addf %23, %25 : vector<8x8xf32>
    %c0_11 = arith.constant 0 : index
    %c0_12 = arith.constant 0 : index
    %27 = vector.load %arg6[%c0_11, %c0_12] : memref<8x8xf32, #tpu.memory_space<vmem>>, vector<8x8xf32>
    tpu.vector_store %arg6[%c0_11, %c0_12], %18 {strides = array<i32>} : memref<8x8xf32, #tpu.memory_space<vmem>>, vector<8x8xf32>,
    %c0_13 = arith.constant 0 : index
    %c0_14 = arith.constant 0 : index
    %28 = vector.load %arg7[%c0_13, %c0_14] : memref<8x8xf32, #tpu.memory_space<vmem>>, vector<8x8xf32>
    tpu.vector_store %arg7[%c0_13, %c0_14], %26 {strides = array<i32>} : memref<8x8xf32, #tpu.memory_space<vmem>>, vector<8x8xf32>,
    return
  }
  func.func @transform_0(%arg0: i32) -> i32 {
    %c0_i32 = arith.constant 0 : i32
    %c0_i32_0 = arith.constant 0 : i32
    return %c0_i32 : i32
  }
  func.func @transform_1(%arg0: i32) -> (i32, i32) {
    %c0_i32 = arith.constant 0 : i32
    %c0_i32_0 = arith.constant 0 : i32
    return %arg0, %c0_i32 : i32, i32
  }
  func.func @transform_2(%arg0: i32) -> (i32, i32) {
    %c0_i32 = arith.constant 0 : i32
    %c0_i32_0 = arith.constant 0 : i32
    return %arg0, %c0_i32 : i32, i32
  }
  func.func @transform_3(%arg0: i32) -> (i32, i32) {
    %c0_i32 = arith.constant 0 : i32
    %c0_i32_0 = arith.constant 0 : i32
    %c0_i32_1 = arith.constant 0 : i32
    return %c0_i32, %c0_i32_0 : i32, i32
  }
  func.func @transform_4(%arg0: i32) -> (i32, i32) {
    %c0_i32 = arith.constant 0 : i32
    %c0_i32_0 = arith.constant 0 : i32
    %c0_i32_1 = arith.constant 0 : i32
    return %c0_i32, %c0_i32_0 : i32, i32
  }
  func.func @transform_5(%arg0: i32) -> (i32, i32) {
    %c0_i32 = arith.constant 0 : i32
    %c0_i32_0 = arith.constant 0 : i32
    return %arg0, %c0_i32 : i32, i32
  }
  func.func @transform_6(%arg0: i32) -> (i32, i32) {
    %c0_i32 = arith.constant 0 : i32
    %c0_i32_0 = arith.constant 0 : i32
    return %arg0, %c0_i32 : i32, i32
  }
}

</mosaic_0001>

<llo_original>
// kernel: predict_module.1
$region0: #{predict_module.1}
  #allocation0 [shape = 'u32[]', space=smem, size = 0x4, offset = 0x4, fixed_abs, tag = 'smem constant byte address 0x4 - core index']
  #allocation1 [shape = 'u32[144,128]{1,0:T(1,128)}', space=vmem, size = 0x12000, scoped, tag = 'internal scratch']
  %s0 = inlined_call_operand.vmem [shape: f32[2], index: 0, kind: input, shape index: {}]
  %s1 = inlined_call_operand.vmem [shape: bf16[64,64], index: 1, kind: input, shape index: {}]
  %s2 = inlined_call_operand.vmem [shape: f32[8,64], index: 2, kind: input, shape index: {}]
  %s3 = inlined_call_operand.vmem [shape: bf16[64,64], index: 3, kind: input, shape index: {}]
  %s4 = inlined_call_operand.vmem [shape: f32[2,64], index: 4, kind: input, shape index: {}]
  %s5 = inlined_call_operand.vmem [shape: f32[8,8], index: 5, kind: output, shape index: {0}]
  %s6 = inlined_call_operand.vmem [shape: f32[8,8], index: 6, kind: output, shape index: {1}]
  %7 = xla_tuple %s5, %s6
  %s8 = sld [smem:[#allocation0]]
  $region42: #{predict_module.1} parent=0
    _
  %s10 = ssub.s32 1, %s8
  %s11 = scalar_select 0, %s10, %s8
  $region1: #{predict_module.1} parent=0
    #allocation2 [shape = 'u8[512]{0}', space=smem, size = 0x200, scoped, tag = 'input window, operand 0, single buffered']
    #allocation3 [shape = 's32[1]{0}', space=sflag, size = 0x4, scoped, tag = 'scoped memory for predict_module.1']
    %12 = vsyncpa [#allocation3], 0
    // Predicated region
    $region2: #{predict_module.1} parent=1 // pred_check
      _
    $region3: #{predict_module.1} parent=1 // pred_check_branch
      %14 = sbr.rel (0) target = $region5
    $region4: #{predict_module.1} parent=1 // pred_region
      %s16 = ssub.s32 16, 16
      %17 = vsyncadd [#allocation3], %s16
      %s19 = sshll.u32 %s0, 4
      %s20 = int_to_ptr.vmem [resolvable:$true] %s19
      %22 = dma.vmem_to_smem %s20, 16, [#allocation2], [#allocation3]
    $region5: #{predict_module.1} parent=1 // pred_fallthru
      _
    // Predicated region
    $region6: #{predict_module.1} parent=1 // pred_check
      _
    $region7: #{predict_module.1} parent=1 // pred_check_branch
      %24 = sbr.rel (0) target = $region9
    $region8: #{predict_module.1} parent=1 // pred_region
      _
    $region9: #{predict_module.1} parent=1 // pred_fallthru
      _
    // Predicated region
    $region10: #{predict_module.1} parent=1 // pred_check
      _
    $region11: #{predict_module.1} parent=1 // pred_check_branch
      %26 = sbr.rel (0) target = $region13
    $region12: #{predict_module.1} parent=1 // pred_region
      _
    $region13: #{predict_module.1} parent=1 // pred_fallthru
      _
    // Predicated region
    $region14: #{predict_module.1} parent=1 // pred_check
      _
    $region15: #{predict_module.1} parent=1 // pred_check_branch
      %28 = sbr.rel (0) target = $region17
    $region16: #{predict_module.1} parent=1 // pred_region
      _
    $region17: #{predict_module.1} parent=1 // pred_fallthru
      _
    // Predicated region
    $region18: #{predict_module.1} parent=1 // pred_check
      _
    $region19: #{predict_module.1} parent=1 // pred_check_branch
      %30 = sbr.rel (0) target = $region21
    $region20: #{predict_module.1} parent=1 // pred_region
      _
    $region21: #{predict_module.1} parent=1 // pred_fallthru
      _
    // Predicated region
    $region22: #{predict_module.1} parent=1 // pred_check
      _
    $region23: #{predict_module.1} parent=1 // pred_check_branch
      %32 = sbr.rel (0) target = $region25
    $region24: #{predict_module.1} parent=1 // pred_region
      %33 = dma.done [#allocation3], 16
    $region25: #{predict_module.1} parent=1 // pred_fallthru
      _
    %34 = sfence
    %v36 = vld [vmem:[%s1] sm:$0xf]
    %v37 = vld [vmem:[%s1 + $0x4] sm:$0xf]
    %v38 = vld [vmem:[%s1 + $0x8] sm:$0xf]
    %v39 = vld [vmem:[%s1 + $0xc] sm:$0xf]
    %v40 = vld [vmem:[%s1 + $0x10] sm:$0xf]
    %v41 = vld [vmem:[%s1 + $0x14] sm:$0xf]
    %v42 = vld [vmem:[%s1 + $0x18] sm:$0xf]
    %v43 = vld [vmem:[%s1 + $0x1c] sm:$0xf]
    %v44 = vld [vmem:[%s3] sm:$0xf]
    %v45 = vld [vmem:[%s3 + $0x4] sm:$0xf]
    %v46 = vld [vmem:[%s3 + $0x8] sm:$0xf]
    %v47 = vld [vmem:[%s3 + $0xc] sm:$0xf]
    %v48 = vld [vmem:[%s3 + $0x10] sm:$0xf]
    %v49 = vld [vmem:[%s3 + $0x14] sm:$0xf]
    %v50 = vld [vmem:[%s3 + $0x18] sm:$0xf]
    %v51 = vld [vmem:[%s3 + $0x1c] sm:$0xf]
    %v60 = vunpack.c.l.b16 %v36
    %v61 = vunpack.c.l.b16 %v37
    %v62 = vunpack.c.l.b16 %v38
    %v63 = vunpack.c.l.b16 %v39
    %v64 = vunpack.c.l.b16 %v40
    %v65 = vunpack.c.l.b16 %v41
    %v66 = vunpack.c.l.b16 %v42
    %v67 = vunpack.c.l.b16 %v43
    %v68 = vpack.c.b16 %v61, %v60
    %v69 = vpack.c.b16 %v63, %v62
    %v70 = vpack.c.b16 %v65, %v64
    %v71 = vpack.c.b16 %v67, %v66
    %v80 = vunpack.c.l.b16 %v44
    %v81 = vunpack.c.l.b16 %v45
    %v82 = vunpack.c.l.b16 %v46
    %v83 = vunpack.c.l.b16 %v47
    %v84 = vunpack.c.l.b16 %v48
    %v85 = vunpack.c.l.b16 %v49
    %v86 = vunpack.c.l.b16 %v50
    %v87 = vunpack.c.l.b16 %v51
    %v88 = vpack.c.b16 %v81, %v80
    %v89 = vpack.c.b16 %v83, %v82
    %v90 = vpack.c.b16 %v85, %v84
    %v91 = vpack.c.b16 %v87, %v86
    %vm96 = vcmask 523264
    %v98 = vsel %vm96, %v68, 0
    %v101 = vsel %vm96, %v69, 0
    %v104 = vsel %vm96, %v70, 0
    %v107 = vsel %vm96, %v71, 0
    %109 = vmatprep.subr.bf16.mxu0 0
    %110 = vmatpush1.bf16.msra.mxu0 %v88
    %111 = vmatprep.subr.bf16.mxu0 0
    %112 = vmatpush1.bf16.msra.mxu0 %v89
    %113 = vmatprep.subr.bf16.mxu0 0
    %114 = vmatpush1.bf16.msra.mxu0 %v90
    %115 = vmatprep.subr.bf16.mxu0 0
    %116 = vmatpush1.bf16.msra.mxu0 %v91
    %117 = vmatprep.subr.bf16.mxu0 0
    %118 = vmatpush1.bf16.msra.mxu0 0
    %119 = vmatprep.subr.bf16.mxu0 0
    %120 = vmatpush1.bf16.msra.mxu0 0
    %121 = vmatprep.subr.bf16.mxu0 0
    %122 = vmatpush1.bf16.msra.mxu0 0
    %123 = vmatprep.subr.bf16.mxu0 0
    %124 = vmatpush1.bf16.msra.mxu0 0
    %125 = vmatprep.subr.bf16.mxu0 0
    %126 = vmatpush1.bf16.msra.mxu0 0
    %127 = vmatprep.subr.bf16.mxu0 0
    %128 = vmatpush1.bf16.msra.mxu0 0
    %129 = vmatprep.subr.bf16.mxu0 0
    %130 = vmatpush1.bf16.msra.mxu0 0
    %131 = vmatprep.subr.bf16.mxu0 0
    %132 = vmatpush1.bf16.msra.mxu0 0
    %133 = vmatprep.subr.bf16.mxu0 0
    %134 = vmatpush1.bf16.msra.mxu0 0
    %135 = vmatprep.subr.bf16.mxu0 0
    %136 = vmatpush1.bf16.msra.mxu0 0
    %137 = vmatprep.subr.bf16.mxu0 0
    %138 = vmatpush1.bf16.msra.mxu0 0
    %139 = vmatprep.subr.bf16.mxu0 0
    %140 = vmatpush1.bf16.msra.mxu0 0
    %141 = vmatprep.mubr.bf16.mxu0 0
    %142 = vmatmul.mubr.bf16.gmra.mrb[0].mxu0 %v98
    %v143 = vpop.f32.mrb[0].mxu0
    %v144 = vadd.f32 0.0, %v143
    %v145 = vpop.f32.mrb[0].mxu0
    %v146 = vpop.f32.mrb[0].mxu0
    %v147 = vadd.f32 0.0, %v146
    %v148 = vpop.f32.mrb[0].mxu0
    %149 = vmatprep.mubr.bf16.mxu0 0
    %150 = vmatmul.mubr.bf16.gmra.mrb[0].mxu0 %v101
    %v151 = vpop.f32.mrb[0].mxu0
    %v152 = vadd.f32 0.0, %v151
    %v153 = vpop.f32.mrb[0].mxu0
    %v154 = vpop.f32.mrb[0].mxu0
    %v155 = vadd.f32 0.0, %v154
    %v156 = vpop.f32.mrb[0].mxu0
    %157 = vmatprep.mubr.bf16.mxu0 0
    %158 = vmatmul.mubr.bf16.gmra.mrb[0].mxu0 %v104
    %v159 = vpop.f32.mrb[0].mxu0
    %v160 = vadd.f32 0.0, %v159
    %v161 = vpop.f32.mrb[0].mxu0
    %v162 = vpop.f32.mrb[0].mxu0
    %v163 = vadd.f32 0.0, %v162
    %v164 = vpop.f32.mrb[0].mxu0
    %165 = vmatprep.mubr.bf16.mxu0 0
    %166 = vmatmul.mubr.bf16.gmra.mrb[0].mxu0 %v107
    %v167 = vpop.f32.mrb[0].mxu0
    %v168 = vadd.f32 0.0, %v167
    %v169 = vpop.f32.mrb[0].mxu0
    %v170 = vpop.f32.mrb[0].mxu0
    %v171 = vadd.f32 0.0, %v170
    %v172 = vpop.f32.mrb[0].mxu0
    %173 = vdwg.mxu0
    %v174 = vld [vmem:[%s2] sm:$0xff]
    %v176 = vcombine.high %v174, %v174
    %v178 = vunpack.c.l.s4 1966171168
    %v179 = vunpack.c.0.s8 %v178
    %v180 = vlaneseq
    %v181 = vshrl.u32 %v180, 7
    %v182 = vsub.s32 %v179, %v181
    %v183 = vrot.slane %v174, %v182
    %v185 = vunpack.c.l.s4 1966171168
    %v186 = vunpack.c.0.s8 %v185
    %v187 = vlaneseq
    %v188 = vshrl.u32 %v187, 7
    %v189 = vsub.s32 %v186, %v188
    %v190 = vrot.slane %v176, %v189
    %v191 = vcombine.high %v183, %v183
    %v192 = vcombine.high %v190, %v190
    %v194 = vunpack.c.l.s4 1966171168
    %v195 = vunpack.c.0.s8 %v194
    %v196 = vlaneseq
    %v197 = vshrl.u32 %v196, 7
    %v198 = vsub.s32 %v195, %v197
    %v199 = vrot.slane %v183, %v198
    %v201 = vunpack.c.l.s4 1966171168
    %v202 = vunpack.c.0.s8 %v201
    %v203 = vlaneseq
    %v204 = vshrl.u32 %v203, 7
    %v205 = vsub.s32 %v202, %v204
    %v206 = vrot.slane %v190, %v205
    %v208 = vunpack.c.l.s4 1966171168
    %v209 = vunpack.c.0.s8 %v208
    %v210 = vlaneseq
    %v211 = vshrl.u32 %v210, 7
    %v212 = vsub.s32 %v209, %v211
    %v213 = vrot.slane %v191, %v212
    %v215 = vunpack.c.l.s4 1966171168
    %v216 = vunpack.c.0.s8 %v215
    %v217 = vlaneseq
    %v218 = vshrl.u32 %v217, 7
    %v219 = vsub.s32 %v216, %v218
    %v220 = vrot.slane %v192, %v219
    %v221 = vcombine.high %v199, %v199
    %v222 = vcombine.high %v206, %v206
    %v223 = vcombine.high %v213, %v213
    %v224 = vcombine.high %v220, %v220
    %v225 = vlaneseq
    %v226 = vshrl.u32 %v225, 7
    %v227 = vsub.s32 0, %v226
    %v228 = vrot.slane %v199, %v227
    %v229 = vlaneseq
    %v230 = vshrl.u32 %v229, 7
    %v231 = vsub.s32 0, %v230
    %v232 = vrot.slane %v213, %v231
    %v233 = vlaneseq
    %v234 = vshrl.u32 %v233, 7
    %v235 = vsub.s32 0, %v234
    %v236 = vrot.slane %v221, %v235
    %v237 = vlaneseq
    %v238 = vshrl.u32 %v237, 7
    %v239 = vsub.s32 0, %v238
    %v240 = vrot.slane %v223, %v239
    %v241 = vlaneseq
    %v242 = vshrl.u32 %v241, 7
    %v243 = vsub.s32 0, %v242
    %v244 = vrot.slane %v206, %v243
    %v245 = vlaneseq
    %v246 = vshrl.u32 %v245, 7
    %v247 = vsub.s32 0, %v246
    %v248 = vrot.slane %v220, %v247
    %v249 = vlaneseq
    %v250 = vshrl.u32 %v249, 7
    %v251 = vsub.s32 0, %v250
    %v252 = vrot.slane %v222, %v251
    %v253 = vlaneseq
    %v254 = vshrl.u32 %v253, 7
    %v255 = vsub.s32 0, %v254
    %v256 = vrot.slane %v224, %v255
    %v265 = vadd.f32 %v144, %v228
    %v266 = vadd.f32 %v147, %v232
    %v267 = vadd.f32 %v152, %v236
    %v268 = vadd.f32 %v155, %v240
    %v269 = vadd.f32 %v160, %v244
    %v270 = vadd.f32 %v163, %v248
    %v271 = vadd.f32 %v168, %v252
    %v272 = vadd.f32 %v171, %v256
    %v273 = vmax.f32 %v265, 0.0
    %v274 = vmax.f32 %v266, 0.0
    %v275 = vmax.f32 %v267, 0.0
    %v276 = vmax.f32 %v268, 0.0
    %v277 = vmax.f32 %v269, 0.0
    %v278 = vmax.f32 %v270, 0.0
    %v279 = vmax.f32 %v271, 0.0
    %v280 = vmax.f32 %v272, 0.0
    %v281 = vld [vmem:[%s4] sm:$0x3]
    %v282 = vlaneseq
    %v283 = vshrl.u32 %v282, 7
    %v284 = vsub.s32 0, %v283
    %v285 = vrot.slane %v281, %v284
    %v286 = vmul.f32 %v273, %v285
    %v287 = vmul.f32 %v274, %v285
    %v288 = vmul.f32 %v275, %v285
    %v289 = vmul.f32 %v276, %v285
    %v290 = vmul.f32 %v277, %v285
    %v291 = vmul.f32 %v278, %v285
    %v292 = vmul.f32 %v279, %v285
    %v293 = vmul.f32 %v280, %v285
    %v294 = vsel %vm96, %v286, 0.0
    %295 = vadd.xlane.f32.xlu0 %v294
    %v296 = vpop.xlane.xlu0 %295
    %v297 = vsel %vm96, %v287, 0.0
    %298 = vadd.xlane.f32.xlu0 %v297
    %v299 = vpop.xlane.xlu0 %298
    %v300 = vsel %vm96, %v288, 0.0
    %301 = vadd.xlane.f32.xlu0 %v300
    %v302 = vpop.xlane.xlu0 %301
    %v303 = vsel %vm96, %v289, 0.0
    %304 = vadd.xlane.f32.xlu0 %v303
    %v305 = vpop.xlane.xlu0 %304
    %v306 = vsel %vm96, %v290, 0.0
    %307 = vadd.xlane.f32.xlu0 %v306
    %v308 = vpop.xlane.xlu0 %307
    %v309 = vsel %vm96, %v291, 0.0
    %310 = vadd.xlane.f32.xlu0 %v309
    %v311 = vpop.xlane.xlu0 %310
    %v312 = vsel %vm96, %v292, 0.0
    %313 = vadd.xlane.f32.xlu0 %v312
    %v314 = vpop.xlane.xlu0 %313
    %v315 = vsel %vm96, %v293, 0.0
    %316 = vadd.xlane.f32.xlu0 %v315
    %v317 = vpop.xlane.xlu0 %316
    %s318 = sld [smem:[#allocation2]]
    %v319 = vstv %s318
    %v320 = vadd.f32 %v296, %v319
    %v321 = vadd.f32 %v299, %v319
    %v322 = vadd.f32 %v302, %v319
    %v323 = vadd.f32 %v305, %v319
    %v324 = vadd.f32 %v308, %v319
    %v325 = vadd.f32 %v311, %v319
    %v326 = vadd.f32 %v314, %v319
    %v327 = vadd.f32 %v317, %v319
    %v328 = vlaneseq
    %v329 = vshrl.u32 %v328, 7
    %v330 = vsub.s32 1, %v329
    %v331 = vrot.slane %v281, %v330
    %v332 = vmul.f32 %v273, %v331
    %v333 = vmul.f32 %v274, %v331
    %v334 = vmul.f32 %v275, %v331
    %v335 = vmul.f32 %v276, %v331
    %v336 = vmul.f32 %v277, %v331
    %v337 = vmul.f32 %v278, %v331
    %v338 = vmul.f32 %v279, %v331
    %v339 = vmul.f32 %v280, %v331
    %v340 = vsel %vm96, %v332, 0.0
    %341 = vadd.xlane.f32.xlu0 %v340
    %v342 = vpop.xlane.xlu0 %341
    %v343 = vsel %vm96, %v333, 0.0
    %344 = vadd.xlane.f32.xlu0 %v343
    %v345 = vpop.xlane.xlu0 %344
    %v346 = vsel %vm96, %v334, 0.0
    %347 = vadd.xlane.f32.xlu0 %v346
    %v348 = vpop.xlane.xlu0 %347
    %v349 = vsel %vm96, %v335, 0.0
    %350 = vadd.xlane.f32.xlu0 %v349
    %v351 = vpop.xlane.xlu0 %350
    %v352 = vsel %vm96, %v336, 0.0
    %353 = vadd.xlane.f32.xlu0 %v352
    %v354 = vpop.xlane.xlu0 %353
    %v355 = vsel %vm96, %v337, 0.0
    %356 = vadd.xlane.f32.xlu0 %v355
    %v357 = vpop.xlane.xlu0 %356
    %v358 = vsel %vm96, %v338, 0.0
    %359 = vadd.xlane.f32.xlu0 %v358
    %v360 = vpop.xlane.xlu0 %359
    %v361 = vsel %vm96, %v339, 0.0
    %362 = vadd.xlane.f32.xlu0 %v361
    %v363 = vpop.xlane.xlu0 %362
    %s364 = sld [smem:[#allocation2 + $0x1]]
    %v365 = vstv %s364
    %v366 = vadd.f32 %v342, %v365
    %v367 = vadd.f32 %v345, %v365
    %v368 = vadd.f32 %v348, %v365
    %v369 = vadd.f32 %v351, %v365
    %v370 = vadd.f32 %v354, %v365
    %v371 = vadd.f32 %v357, %v365
    %v372 = vadd.f32 %v360, %v365
    %v373 = vadd.f32 %v363, %v365
    %v382 = vlaneseq
    %v383 = vand.u32 %v382, 127
    %v384 = vlaneseq
    %v385 = vshrl.u32 %v384, 7
    %v386 = vsub.s32 %v383, %v385
    %v387 = vrot.slane %v320, %v386
    %v388 = vlaneseq
    %v389 = vshrl.u32 %v388, 7
    %v390 = vsub.s32 %v383, %v389
    %v391 = vrot.slane %v321, %v390
    %v392 = vlaneseq
    %v393 = vshrl.u32 %v392, 7
    %v394 = vsub.s32 %v383, %v393
    %v395 = vrot.slane %v322, %v394
    %v396 = vlaneseq
    %v397 = vshrl.u32 %v396, 7
    %v398 = vsub.s32 %v383, %v397
    %v399 = vrot.slane %v323, %v398
    %v400 = vlaneseq
    %v401 = vshrl.u32 %v400, 7
    %v402 = vsub.s32 %v383, %v401
    %v403 = vrot.slane %v324, %v402
    %v404 = vlaneseq
    %v405 = vshrl.u32 %v404, 7
    %v406 = vsub.s32 %v383, %v405
    %v407 = vrot.slane %v325, %v406
    %v408 = vlaneseq
    %v409 = vshrl.u32 %v408, 7
    %v410 = vsub.s32 %v383, %v409
    %v411 = vrot.slane %v326, %v410
    %v412 = vlaneseq
    %v413 = vshrl.u32 %v412, 7
    %v414 = vsub.s32 %v383, %v413
    %v415 = vrot.slane %v327, %v414
    %vm416 = vcmask 1041409
    %v417 = vsel %vm416, %v391, %v387
    %vm418 = vcmask 1042434
    %v419 = vsel %vm418, %v395, %v417
    %vm420 = vcmask 1043459
    %v421 = vsel %vm420, %v399, %v419
    %vm422 = vcmask 1044484
    %v423 = vsel %vm422, %v403, %v421
    %vm424 = vcmask 1045509
    %v425 = vsel %vm424, %v407, %v423
    %vm426 = vcmask 1046534
    %v427 = vsel %vm426, %v411, %v425
    %vm428 = vcmask 1047559
    %v429 = vsel %vm428, %v415, %v427
    %vm431 = vcmask 64512
    %432 = vst.msk [vmem:[%s5] sm:$0xff] %vm431, %v429
    %v441 = vlaneseq
    %v442 = vshrl.u32 %v441, 7
    %v443 = vsub.s32 %v383, %v442
    %v444 = vrot.slane %v366, %v443
    %v445 = vlaneseq
    %v446 = vshrl.u32 %v445, 7
    %v447 = vsub.s32 %v383, %v446
    %v448 = vrot.slane %v367, %v447
    %v449 = vlaneseq
    %v450 = vshrl.u32 %v449, 7
    %v451 = vsub.s32 %v383, %v450
    %v452 = vrot.slane %v368, %v451
    %v453 = vlaneseq
    %v454 = vshrl.u32 %v453, 7
    %v455 = vsub.s32 %v383, %v454
    %v456 = vrot.slane %v369, %v455
    %v457 = vlaneseq
    %v458 = vshrl.u32 %v457, 7
    %v459 = vsub.s32 %v383, %v458
    %v460 = vrot.slane %v370, %v459
    %v461 = vlaneseq
    %v462 = vshrl.u32 %v461, 7
    %v463 = vsub.s32 %v383, %v462
    %v464 = vrot.slane %v371, %v463
    %v465 = vlaneseq
    %v466 = vshrl.u32 %v465, 7
    %v467 = vsub.s32 %v383, %v466
    %v468 = vrot.slane %v372, %v467
    %v469 = vlaneseq
    %v470 = vshrl.u32 %v469, 7
    %v471 = vsub.s32 %v383, %v470
    %v472 = vrot.slane %v373, %v471
    %v473 = vsel %vm416, %v448, %v444
    %v474 = vsel %vm418, %v452, %v473
    %v475 = vsel %vm420, %v456, %v474
    %v476 = vsel %vm422, %v460, %v475
    %v477 = vsel %vm424, %v464, %v476
    %v478 = vsel %vm426, %v468, %v477
    %v479 = vsel %vm428, %v472, %v478
    %481 = vst.msk [vmem:[%s6] sm:$0xff] %vm431, %v479
    // Predicated region
    $region26: #{predict_module.1} parent=1 // pred_check
      _
    $region27: #{predict_module.1} parent=1 // pred_check_branch
      %483 = sbr.rel (0) target = $region29
    $region28: #{predict_module.1} parent=1 // pred_region
      _
    $region29: #{predict_module.1} parent=1 // pred_fallthru
      _
    // Predicated region
    $region30: #{predict_module.1} parent=1 // pred_check
      _
    $region31: #{predict_module.1} parent=1 // pred_check_branch
      %485 = sbr.rel (0) target = $region33
    $region32: #{predict_module.1} parent=1 // pred_region
      _
    $region33: #{predict_module.1} parent=1 // pred_fallthru
      _
    // Predicated region
    $region34: #{predict_module.1} parent=1 // pred_check
      _
    $region35: #{predict_module.1} parent=1 // pred_check_branch
      %487 = sbr.rel (0) target = $region37
    $region36: #{predict_module.1} parent=1 // pred_region
      _
    $region37: #{predict_module.1} parent=1 // pred_fallthru
      _
    // Predicated region
    $region38: #{predict_module.1} parent=1 // pred_check
      _
    $region39: #{predict_module.1} parent=1 // pred_check_branch
      %489 = sbr.rel (0) target = $region41
    $region40: #{predict_module.1} parent=1 // pred_region
      _
    $region41: #{predict_module.1} parent=1 // pred_fallthru
      _
    %490 = vsyncpa [#allocation3], 1

</llo_original>
